<compile_context>
chip_gen: v5e
topology: v5e:2x2
jax: 0.10.0
libtpu: 0.0.40
codegen_flags: <defaults>
</compile_context>

<pallas_src>
import functools
import math

import numpy as np
import jax
import jax.numpy as jnp
from jax import lax
from jax.experimental import pallas as pl
from jax.experimental.pallas import tpu as pltpu

EPS = 1e-5


def _erf(x):
    # Abramowitz & Stegun 7.1.26 polynomial (|abs err| < 1.5e-7); only ops that
    # lower cleanly in Mosaic.  Exact reciprocal kept for accuracy headroom.
    a1, a2, a3, a4, a5 = 0.254829592, -0.284496736, 1.421413741, -1.453152027, 1.061405429
    p = 0.3275911
    ax = jnp.abs(x)
    t = pl.reciprocal(1.0 + p * ax, approx=False)
    poly = ((((a5 * t + a4) * t + a3) * t + a2) * t + a1) * t
    y = 1.0 - poly * jnp.exp(-ax * ax)
    return jnp.where(x < 0, -y, y)


def _gelu(x):
    # exact (erf-based) GELU, matching torch.nn.functional.gelu default
    return 0.5 * x * (1.0 + _erf(x * 0.7071067811865476))


def residual_cnn_kernel(x_ref, s_ref, st_ref, mask_ref,
                        g1_ref, be1_ref, g2_ref, be2_ref,
                        w1_ref, b1_ref, w2_ref, b2_ref,
                        out_ref, *, offsets, n_feats, bc):
    """Whole ResidualCNN forward on one (B*C, H*W) activation slab."""
    f32 = jnp.float32
    x = x_ref[...]                      # (BC, HW)  lane-dense activation slab
    s = s_ref[...]                      # (HW, W)   LN reduce-over-n_feats operator
    st = st_ref[...]                    # (W, HW)   LN broadcast-back operator
    hw = x.shape[1]
    inv_n = 1.0 / n_feats

    def ln_gelu(v, g_row, b_row):
        # Fused single-pass LayerNorm over n_feats: one MXU reduce for
        # [v ; v*v], one MXU broadcast-back for [mean ; rsqrt].
        red = jnp.dot(jnp.concatenate([v, v * v], axis=0), s,
                      preferred_element_type=f32) * inv_n          # (2*BC, W)
        m, ex2 = red[:bc], red[bc:]
        inv = lax.rsqrt(ex2 - m * m + EPS)                          # (BC, W)
        back = jnp.dot(jnp.concatenate([m, inv], axis=0), st,
                       preferred_element_type=f32)                  # (2*BC, HW)
        m_b, inv_b = back[:bc], back[bc:]
        return _gelu((v - m_b) * inv_b * g_row + b_row)

    def conv(v, w_cat, bias_col):
        # Each tap: lane roll (XLU) + 0/1 zero-padding mask (VPU); all taps'
        # channel mixes fused into a single MXU matmul against the
        # block-diagonal-per-tap weight w_cat = [W_t (x) I_B]_t  (BC, KK*BC).
        pieces = []
        for t, off in enumerate(offsets):
            if off == 0:
                r = v
            else:
                r = pltpu.roll(v, shift=(hw - off) % hw, axis=1)
            pieces.append(r * mask_ref[t])                          # (BC, HW)
        v_cat = jnp.concatenate(pieces, axis=0)                     # (KK*BC, HW)
        return jnp.dot(w_cat, v_cat, preferred_element_type=f32) + bias_col

    a1 = ln_gelu(x, g1_ref[...], be1_ref[...])        # layer_norm1 + gelu (+ dropout1 = id)
    y1 = conv(a1, w1_ref[...], b1_ref[...])           # cnn1 (stays in vregs)
    a2 = ln_gelu(y1, g2_ref[...], be2_ref[...])       # layer_norm2 + gelu (+ dropout2 = id)
    out_ref[...] = conv(a2, w2_ref[...], b2_ref[...]) + x   # cnn2 + residual; full-width store


def make_residual_cnn(params, kernel_size, x_shape):
    """Build all constants ONCE and return a jitted forward(x) closure."""
    B, C, H, W = x_shape
    K = kernel_size
    P = K // 2
    HW = H * W
    KK = K * K
    BC = B * C
    f32 = jnp.float32
    assert params["w1"].shape == (C, C, K, K), "residual add requires in_channels == out_channels"

    # ---- per-tap lane offsets + zero-padding masks (host side, once) ----
    offsets = []
    mask = np.zeros((KK, 1, HW), np.float32)
    for ky in range(K):
        for kx in range(K):
            t = ky * K + kx
            dy, dx = ky - P, kx - P
            offsets.append(dy * W + dx)
            for h in range(H):
                if not (0 <= h + dy < H):
                    continue
                for w in range(W):
                    if 0 <= w + dx < W:
                        mask[t, 0, h * W + w] = 1.0

    # ---- LayerNorm reduce / broadcast operators over the n_feats (H) axis ----
    S = np.tile(np.eye(W, dtype=np.float32), (H, 1))       # (HW, W)
    St = np.ascontiguousarray(S.T)                          # (W, HW)

    # ---- weight re-layout: per-tap block-diagonal (over batch) mixes, concatenated ----
    eye_b = np.eye(B, dtype=np.float32)

    def stack_weights(w_oihw):
        w = np.asarray(w_oihw, dtype=np.float32)
        blocks = [np.kron(eye_b, w[:, :, ky, kx]) for ky in range(K) for kx in range(K)]
        return np.concatenate(blocks, axis=1)               # (BC, KK*BC)

    w1c = stack_weights(params["w1"])
    w2c = stack_weights(params["w2"])
    b1c = np.tile(np.asarray(params["b1"], np.float32).reshape(C, 1), (B, 1))   # (BC, 1)
    b2c = np.tile(np.asarray(params["b2"], np.float32).reshape(C, 1), (B, 1))   # (BC, 1)

    g1 = np.repeat(np.asarray(params["ln1_gamma"], np.float32), W).reshape(1, HW)
    be1 = np.repeat(np.asarray(params["ln1_beta"], np.float32), W).reshape(1, HW)
    g2 = np.repeat(np.asarray(params["ln2_gamma"], np.float32), W).reshape(1, HW)
    be2 = np.repeat(np.asarray(params["ln2_beta"], np.float32), W).reshape(1, HW)

    consts = tuple(jnp.asarray(a, dtype=f32) for a in
                   (S, St, mask, g1, be1, g2, be2, w1c, b1c, w2c, b2c))

    kern = functools.partial(residual_cnn_kernel,
                             offsets=tuple(offsets), n_feats=H, bc=BC)

    # Single invocation, no grid: every operand is one small full-array VMEM
    # block (activations are exactly one (8,128) vreg at the demo shape).
    pc = pl.pallas_call(kern, out_shape=jax.ShapeDtypeStruct((BC, HW), f32))

    @jax.jit
    def forward(x):
        x2 = x.astype(f32).reshape(BC, HW)      # pure reshape, no transpose
        out2 = pc(x2, *consts)
        return out2.reshape(B, C, H, W)

    return forward


def reference_forward(x, params, kernel_size):
    """Pure-JAX reference mirroring the PyTorch module (eval mode)."""
    P = kernel_size // 2

    def ln(v, g, b):
        mean = v.mean(axis=2, keepdims=True)
        var = ((v - mean) ** 2).mean(axis=2, keepdims=True)
        return (v - mean) / jnp.sqrt(var + EPS) * g.reshape(1, 1, -1, 1) + b.reshape(1, 1, -1, 1)

    def conv(v, w, b):
        out = lax.conv_general_dilated(
            v, w, window_strides=(1, 1), padding=[(P, P), (P, P)],
            dimension_numbers=("NCHW", "OIHW", "NCHW"),
            precision=lax.Precision.HIGHEST)
        return out + b.reshape(1, -1, 1, 1)

    a = jax.nn.gelu(ln(x, params["ln1_gamma"], params["ln1_beta"]), approximate=False)
    y = conv(a, params["w1"], params["b1"])
    a2 = jax.nn.gelu(ln(y, params["ln2_gamma"], params["ln2_beta"]), approximate=False)
    out = conv(a2, params["w2"], params["b2"])
    return out + x


if __name__ == "__main__":
    # ResidualCNN(in_channels=4, out_channels=4, kernel=3, stride=1, dropout=0.1, n_feats=16)
    B, C, H, W, K = 2, 4, 16, 8, 3   # H = n_feats, W = time  (B*C = 8 sublanes, H*W = 128 lanes)

    key = jax.random.PRNGKey(0)
    kx, kw1, kb1, kw2, kb2, kg1, kbe1, kg2, kbe2 = jax.random.split(key, 9)

    x = jax.random.normal(kx, (B, C, H, W), dtype=jnp.float32)

    bound = 1.0 / math.sqrt(C * K * K)   # PyTorch Conv2d default uniform bound
    params = {
        "w1": jax.random.uniform(kw1, (C, C, K, K), jnp.float32, -bound, bound),
        "b1": jax.random.uniform(kb1, (C,), jnp.float32, -bound, bound),
        "w2": jax.random.uniform(kw2, (C, C, K, K), jnp.float32, -bound, bound),
        "b2": jax.random.uniform(kb2, (C,), jnp.float32, -bound, bound),
        "ln1_gamma": 1.0 + 0.1 * jax.random.normal(kg1, (H,), jnp.float32),
        "ln1_beta": 0.1 * jax.random.normal(kbe1, (H,), jnp.float32),
        "ln2_gamma": 1.0 + 0.1 * jax.random.normal(kg2, (H,), jnp.float32),
        "ln2_beta": 0.1 * jax.random.normal(kbe2, (H,), jnp.float32),
    }

    # Constants / weight re-layout built exactly once; the returned closure is
    # the reusable per-call path.
    forward = make_residual_cnn(params, K, (B, C, H, W))

    out = jax.block_until_ready(forward(x))

    ref = jax.block_until_ready(reference_forward(x, params, K))
    assert out.shape == (B, C, H, W)
    if not jnp.allclose(out, ref, rtol=2e-3, atol=2e-3):
        max_err = float(jnp.max(jnp.abs(out - ref)))
        raise AssertionError(f"Pallas kernel mismatch vs reference, max abs err = {max_err}")

    print("KERNEL_OK")
</pallas_src>

<mosaic_0001>
module attributes {stable_mosaic.version = 11 : i64} {
  func.func @residual_cnn_kernel(%arg0: memref<8x128xf32, #tpu.memory_space<vmem>>, %arg1: memref<128x8xf32, #tpu.memory_space<vmem>>, %arg2: memref<8x128xf32, #tpu.memory_space<vmem>>, %arg3: memref<9x1x128xf32, #tpu.memory_space<vmem>>, %arg4: memref<1x128xf32, #tpu.memory_space<vmem>>, %arg5: memref<1x128xf32, #tpu.memory_space<vmem>>, %arg6: memref<1x128xf32, #tpu.memory_space<vmem>>, %arg7: memref<1x128xf32, #tpu.memory_space<vmem>>, %arg8: memref<8x72xf32, #tpu.memory_space<vmem>>, %arg9: memref<8x1xf32, #tpu.memory_space<vmem>>, %arg10: memref<8x72xf32, #tpu.memory_space<vmem>>, %arg11: memref<8x1xf32, #tpu.memory_space<vmem>>, %arg12: memref<8x128xf32, #tpu.memory_space<vmem>>) attributes {dimension_semantics = [], scalar_prefetch = 0 : i64, scratch_operands = 0 : i64, tpu.core_type = #tpu.core_type<tc>} {
    %c0 = arith.constant 0 : index
    %c0_0 = arith.constant 0 : index
    %0 = vector.load %arg0[%c0, %c0_0] : memref<8x128xf32, #tpu.memory_space<vmem>>, vector<8x128xf32>
    %c0_1 = arith.constant 0 : index
    %c0_2 = arith.constant 0 : index
    %1 = vector.load %arg1[%c0_1, %c0_2] : memref<128x8xf32, #tpu.memory_space<vmem>>, vector<128x8xf32>
    %c0_3 = arith.constant 0 : index
    %c0_4 = arith.constant 0 : index
    %2 = vector.load %arg2[%c0_3, %c0_4] : memref<8x128xf32, #tpu.memory_space<vmem>>, vector<8x128xf32>
    %c0_5 = arith.constant 0 : index
    %c0_6 = arith.constant 0 : index
    %3 = vector.load %arg4[%c0_5, %c0_6] : memref<1x128xf32, #tpu.memory_space<vmem>>, vector<1x128xf32>
    %c0_7 = arith.constant 0 : index
    %c0_8 = arith.constant 0 : index
    %4 = vector.load %arg5[%c0_7, %c0_8] : memref<1x128xf32, #tpu.memory_space<vmem>>, vector<1x128xf32>
    %5 = arith.mulf %0, %0 : vector<8x128xf32>
    %6 = tpu.concatenate %0, %5 in 0 : vector<8x128xf32>, vector<8x128xf32> -> vector<16x128xf32>
    %cst = arith.constant dense<0.000000e+00> : vector<16x8xf32>
    %7 = tpu.matmul %6, %1, %cst {dimension_numbers = #tpu.dot_dimension_numbers<[1], [0], [0], [1], [0, 0, 1, 1], [], []>} : vector<16x128xf32>, vector<128x8xf32>, vector<16x8xf32> -> vector<16x8xf32>
    %cst_9 = arith.constant 6.250000e-02 : f32
    %8 = vector.broadcast %cst_9 : f32 to vector<16x8xf32>
    %9 = arith.mulf %7, %8 : vector<16x8xf32>
    %10 = vector.extract_strided_slice %9 {offsets = [0, 0], sizes = [8, 8], strides = [1, 1]} : vector<16x8xf32> to vector<8x8xf32>
    %11 = vector.extract_strided_slice %9 {offsets = [8, 0], sizes = [8, 8], strides = [1, 1]} : vector<16x8xf32> to vector<8x8xf32>
    %12 = arith.mulf %10, %10 : vector<8x8xf32>
    %13 = arith.subf %11, %12 : vector<8x8xf32>
    %cst_10 = arith.constant 9.99999974E-6 : f32
    %14 = vector.broadcast %cst_10 : f32 to vector<8x8xf32>
    %15 = arith.addf %13, %14 : vector<8x8xf32>
    %16 = math.rsqrt %15 : vector<8x8xf32>
    %17 = tpu.concatenate %10, %16 in 0 : vector<8x8xf32>, vector<8x8xf32> -> vector<16x8xf32>
    %cst_11 = arith.constant dense<0.000000e+00> : vector<16x128xf32>
    %18 = tpu.matmul %17, %2, %cst_11 {dimension_numbers = #tpu.dot_dimension_numbers<[1], [0], [0], [1], [0, 0, 1, 1], [], []>} : vector<16x8xf32>, vector<8x128xf32>, vector<16x128xf32> -> vector<16x128xf32>
    %19 = vector.extract_strided_slice %18 {offsets = [0, 0], sizes = [8, 128], strides = [1, 1]} : vector<16x128xf32> to vector<8x128xf32>
    %20 = vector.extract_strided_slice %18 {offsets = [8, 0], sizes = [8, 128], strides = [1, 1]} : vector<16x128xf32> to vector<8x128xf32>
    %21 = arith.subf %0, %19 : vector<8x128xf32>
    %22 = arith.mulf %21, %20 : vector<8x128xf32>
    %23 = vector.broadcast %3 : vector<1x128xf32> to vector<8x128xf32>
    %24 = arith.mulf %22, %23 : vector<8x128xf32>
    %25 = vector.broadcast %4 : vector<1x128xf32> to vector<8x128xf32>
    %26 = arith.addf %24, %25 : vector<8x128xf32>
    %cst_12 = arith.constant 5.000000e-01 : f32
    %27 = vector.broadcast %cst_12 : f32 to vector<8x128xf32>
    %28 = arith.mulf %27, %26 : vector<8x128xf32>
    %cst_13 = arith.constant 0.707106769 : f32
    %29 = vector.broadcast %cst_13 : f32 to vector<8x128xf32>
    %30 = arith.mulf %26, %29 : vector<8x128xf32>
    %31 = math.absf %30 : vector<8x128xf32>
    %cst_14 = arith.constant 0.327591091 : f32
    %32 = vector.broadcast %cst_14 : f32 to vector<8x128xf32>
    %33 = arith.mulf %32, %31 : vector<8x128xf32>
    %cst_15 = arith.constant 1.000000e+00 : f32
    %34 = vector.broadcast %cst_15 : f32 to vector<8x128xf32>
    %35 = arith.addf %34, %33 : vector<8x128xf32>
    %36 = tpu.reciprocal %35 : vector<8x128xf32> -> vector<8x128xf32>
    %cst_16 = arith.constant 1.06140542 : f32
    %37 = vector.broadcast %cst_16 : f32 to vector<8x128xf32>
    %38 = arith.mulf %37, %36 : vector<8x128xf32>
    %cst_17 = arith.constant -1.45315206 : f32
    %39 = vector.broadcast %cst_17 : f32 to vector<8x128xf32>
    %40 = arith.addf %38, %39 : vector<8x128xf32>
    %41 = arith.mulf %40, %36 : vector<8x128xf32>
    %cst_18 = arith.constant 1.42141378 : f32
    %42 = vector.broadcast %cst_18 : f32 to vector<8x128xf32>
    %43 = arith.addf %41, %42 : vector<8x128xf32>
    %44 = arith.mulf %43, %36 : vector<8x128xf32>
    %cst_19 = arith.constant -0.284496725 : f32
    %45 = vector.broadcast %cst_19 : f32 to vector<8x128xf32>
    %46 = arith.addf %44, %45 : vector<8x128xf32>
    %47 = arith.mulf %46, %36 : vector<8x128xf32>
    %cst_20 = arith.constant 0.254829586 : f32
    %48 = vector.broadcast %cst_20 : f32 to vector<8x128xf32>
    %49 = arith.addf %47, %48 : vector<8x128xf32>
    %50 = arith.mulf %49, %36 : vector<8x128xf32>
    %cst_21 = arith.constant 0.000000e+00 : f32
    %51 = vector.broadcast %cst_21 : f32 to vector<8x128xf32>
    %52 = arith.subf %51, %31 : vector<8x128xf32>
    %53 = arith.mulf %52, %31 : vector<8x128xf32>
    %54 = math.exp %53 : vector<8x128xf32>
    %55 = arith.mulf %50, %54 : vector<8x128xf32>
    %cst_22 = arith.constant 1.000000e+00 : f32
    %56 = vector.broadcast %cst_22 : f32 to vector<8x128xf32>
    %57 = arith.subf %56, %55 : vector<8x128xf32>
    %cst_23 = arith.constant 0.000000e+00 : f32
    %58 = vector.broadcast %cst_23 : f32 to vector<8x128xf32>
    %59 = arith.cmpf olt, %30, %58 : vector<8x128xf32>
    %cst_24 = arith.constant 0.000000e+00 : f32
    %60 = vector.broadcast %cst_24 : f32 to vector<8x128xf32>
    %61 = arith.subf %60, %57 : vector<8x128xf32>
    %62 = arith.select %59, %61, %57 : vector<8x128xi1>, vector<8x128xf32>
    %cst_25 = arith.constant 1.000000e+00 : f32
    %63 = vector.broadcast %cst_25 : f32 to vector<8x128xf32>
    %64 = arith.addf %63, %62 : vector<8x128xf32>
    %65 = arith.mulf %28, %64 : vector<8x128xf32>
    %c0_26 = arith.constant 0 : index
    %c0_27 = arith.constant 0 : index
    %66 = vector.load %arg8[%c0_26, %c0_27] : memref<8x72xf32, #tpu.memory_space<vmem>>, vector<8x72xf32>
    %c0_28 = arith.constant 0 : index
    %c0_29 = arith.constant 0 : index
    %67 = vector.load %arg9[%c0_28, %c0_29] : memref<8x1xf32, #tpu.memory_space<vmem>>, vector<8x1xf32>
    %c9_i32 = arith.constant 9 : i32
    %68 = tpu.dynamic_rotate %65 by %c9_i32 dim 1 : vector<8x128xf32>, i32 -> vector<8x128xf32>
    %c0_30 = arith.constant 0 : index
    %c0_31 = arith.constant 0 : index
    %c0_32 = arith.constant 0 : index
    %69 = vector.load %arg3[%c0_30, %c0_31, %c0_32] : memref<9x1x128xf32, #tpu.memory_space<vmem>>, vector<1x1x128xf32>
    %70 = vector.shape_cast %69 : vector<1x1x128xf32> to vector<1x128xf32>
    %71 = vector.broadcast %70 : vector<1x128xf32> to vector<8x128xf32>
    %72 = arith.mulf %68, %71 : vector<8x128xf32>
    %c8_i32 = arith.constant 8 : i32
    %73 = tpu.dynamic_rotate %65 by %c8_i32 dim 1 : vector<8x128xf32>, i32 -> vector<8x128xf32>
    %c1 = arith.constant 1 : index
    %c0_33 = arith.constant 0 : index
    %c0_34 = arith.constant 0 : index
    %74 = vector.load %arg3[%c1, %c0_33, %c0_34] : memref<9x1x128xf32, #tpu.memory_space<vmem>>, vector<1x1x128xf32>
    %75 = vector.shape_cast %74 : vector<1x1x128xf32> to vector<1x128xf32>
    %76 = vector.broadcast %75 : vector<1x128xf32> to vector<8x128xf32>
    %77 = arith.mulf %73, %76 : vector<8x128xf32>
    %c7_i32 = arith.constant 7 : i32
    %78 = tpu.dynamic_rotate %65 by %c7_i32 dim 1 : vector<8x128xf32>, i32 -> vector<8x128xf32>
    %c2 = arith.constant 2 : index
    %c0_35 = arith.constant 0 : index
    %c0_36 = arith.constant 0 : index
    %79 = vector.load %arg3[%c2, %c0_35, %c0_36] : memref<9x1x128xf32, #tpu.memory_space<vmem>>, vector<1x1x128xf32>
    %80 = vector.shape_cast %79 : vector<1x1x128xf32> to vector<1x128xf32>
    %81 = vector.broadcast %80 : vector<1x128xf32> to vector<8x128xf32>
    %82 = arith.mulf %78, %81 : vector<8x128xf32>
    %c1_i32 = arith.constant 1 : i32
    %83 = tpu.dynamic_rotate %65 by %c1_i32 dim 1 : vector<8x128xf32>, i32 -> vector<8x128xf32>
    %c3 = arith.constant 3 : index
    %c0_37 = arith.constant 0 : index
    %c0_38 = arith.constant 0 : index
    %84 = vector.load %arg3[%c3, %c0_37, %c0_38] : memref<9x1x128xf32, #tpu.memory_space<vmem>>, vector<1x1x128xf32>
    %85 = vector.shape_cast %84 : vector<1x1x128xf32> to vector<1x128xf32>
    %86 = vector.broadcast %85 : vector<1x128xf32> to vector<8x128xf32>
    %87 = arith.mulf %83, %86 : vector<8x128xf32>
    %c4 = arith.constant 4 : index
    %c0_39 = arith.constant 0 : index
    %c0_40 = arith.constant 0 : index
    %88 = vector.load %arg3[%c4, %c0_39, %c0_40] : memref<9x1x128xf32, #tpu.memory_space<vmem>>, vector<1x1x128xf32>
    %89 = vector.shape_cast %88 : vector<1x1x128xf32> to vector<1x128xf32>
    %90 = vector.broadcast %89 : vector<1x128xf32> to vector<8x128xf32>
    %91 = arith.mulf %65, %90 : vector<8x128xf32>
    %c127_i32 = arith.constant 127 : i32
    %92 = tpu.dynamic_rotate %65 by %c127_i32 dim 1 : vector<8x128xf32>, i32 -> vector<8x128xf32>
    %c5 = arith.constant 5 : index
    %c0_41 = arith.constant 0 : index
    %c0_42 = arith.constant 0 : index
    %93 = vector.load %arg3[%c5, %c0_41, %c0_42] : memref<9x1x128xf32, #tpu.memory_space<vmem>>, vector<1x1x128xf32>
    %94 = vector.shape_cast %93 : vector<1x1x128xf32> to vector<1x128xf32>
    %95 = vector.broadcast %94 : vector<1x128xf32> to vector<8x128xf32>
    %96 = arith.mulf %92, %95 : vector<8x128xf32>
    %c121_i32 = arith.constant 121 : i32
    %97 = tpu.dynamic_rotate %65 by %c121_i32 dim 1 : vector<8x128xf32>, i32 -> vector<8x128xf32>
    %c6 = arith.constant 6 : index
    %c0_43 = arith.constant 0 : index
    %c0_44 = arith.constant 0 : index
    %98 = vector.load %arg3[%c6, %c0_43, %c0_44] : memref<9x1x128xf32, #tpu.memory_space<vmem>>, vector<1x1x128xf32>
    %99 = vector.shape_cast %98 : vector<1x1x128xf32> to vector<1x128xf32>
    %100 = vector.broadcast %99 : vector<1x128xf32> to vector<8x128xf32>
    %101 = arith.mulf %97, %100 : vector<8x128xf32>
    %c120_i32 = arith.constant 120 : i32
    %102 = tpu.dynamic_rotate %65 by %c120_i32 dim 1 : vector<8x128xf32>, i32 -> vector<8x128xf32>
    %c7 = arith.constant 7 : index
    %c0_45 = arith.constant 0 : index
    %c0_46 = arith.constant 0 : index
    %103 = vector.load %arg3[%c7, %c0_45, %c0_46] : memref<9x1x128xf32, #tpu.memory_space<vmem>>, vector<1x1x128xf32>
    %104 = vector.shape_cast %103 : vector<1x1x128xf32> to vector<1x128xf32>
    %105 = vector.broadcast %104 : vector<1x128xf32> to vector<8x128xf32>
    %106 = arith.mulf %102, %105 : vector<8x128xf32>
    %c119_i32 = arith.constant 119 : i32
    %107 = tpu.dynamic_rotate %65 by %c119_i32 dim 1 : vector<8x128xf32>, i32 -> vector<8x128xf32>
    %c8 = arith.constant 8 : index
    %c0_47 = arith.constant 0 : index
    %c0_48 = arith.constant 0 : index
    %108 = vector.load %arg3[%c8, %c0_47, %c0_48] : memref<9x1x128xf32, #tpu.memory_space<vmem>>, vector<1x1x128xf32>
    %109 = vector.shape_cast %108 : vector<1x1x128xf32> to vector<1x128xf32>
    %110 = vector.broadcast %109 : vector<1x128xf32> to vector<8x128xf32>
    %111 = arith.mulf %107, %110 : vector<8x128xf32>
    %112 = tpu.concatenate %72, %77, %82, %87, %91, %96, %101, %106, %111 in 0 : vector<8x128xf32>, vector<8x128xf32>, vector<8x128xf32>, vector<8x128xf32>, vector<8x128xf32>, vector<8x128xf32>, vector<8x128xf32>, vector<8x128xf32>, vector<8x128xf32> -> vector<72x128xf32>
    %cst_49 = arith.constant dense<0.000000e+00> : vector<8x128xf32>
    %113 = tpu.matmul %66, %112, %cst_49 {dimension_numbers = #tpu.dot_dimension_numbers<[1], [0], [0], [1], [0, 0, 1, 1], [], []>} : vector<8x72xf32>, vector<72x128xf32>, vector<8x128xf32> -> vector<8x128xf32>
    %114 = vector.broadcast %67 : vector<8x1xf32> to vector<8x128xf32>
    %115 = arith.addf %113, %114 : vector<8x128xf32>
    %c0_50 = arith.constant 0 : index
    %c0_51 = arith.constant 0 : index
    %116 = vector.load %arg6[%c0_50, %c0_51] : memref<1x128xf32, #tpu.memory_space<vmem>>, vector<1x128xf32>
    %c0_52 = arith.constant 0 : index
    %c0_53 = arith.constant 0 : index
    %117 = vector.load %arg7[%c0_52, %c0_53] : memref<1x128xf32, #tpu.memory_space<vmem>>, vector<1x128xf32>
    %118 = arith.mulf %115, %115 : vector<8x128xf32>
    %119 = tpu.concatenate %115, %118 in 0 : vector<8x128xf32>, vector<8x128xf32> -> vector<16x128xf32>
    %cst_54 = arith.constant dense<0.000000e+00> : vector<16x8xf32>
    %120 = tpu.matmul %119, %1, %cst_54 {dimension_numbers = #tpu.dot_dimension_numbers<[1], [0], [0], [1], [0, 0, 1, 1], [], []>} : vector<16x128xf32>, vector<128x8xf32>, vector<16x8xf32> -> vector<16x8xf32>
    %cst_55 = arith.constant 6.250000e-02 : f32
    %121 = vector.broadcast %cst_55 : f32 to vector<16x8xf32>
    %122 = arith.mulf %120, %121 : vector<16x8xf32>
    %123 = vector.extract_strided_slice %122 {offsets = [0, 0], sizes = [8, 8], strides = [1, 1]} : vector<16x8xf32> to vector<8x8xf32>
    %124 = vector.extract_strided_slice %122 {offsets = [8, 0], sizes = [8, 8], strides = [1, 1]} : vector<16x8xf32> to vector<8x8xf32>
    %125 = arith.mulf %123, %123 : vector<8x8xf32>
    %126 = arith.subf %124, %125 : vector<8x8xf32>
    %cst_56 = arith.constant 9.99999974E-6 : f32
    %127 = vector.broadcast %cst_56 : f32 to vector<8x8xf32>
    %128 = arith.addf %126, %127 : vector<8x8xf32>
    %129 = math.rsqrt %128 : vector<8x8xf32>
    %130 = tpu.concatenate %123, %129 in 0 : vector<8x8xf32>, vector<8x8xf32> -> vector<16x8xf32>
    %cst_57 = arith.constant dense<0.000000e+00> : vector<16x128xf32>
    %131 = tpu.matmul %130, %2, %cst_57 {dimension_numbers = #tpu.dot_dimension_numbers<[1], [0], [0], [1], [0, 0, 1, 1], [], []>} : vector<16x8xf32>, vector<8x128xf32>, vector<16x128xf32> -> vector<16x128xf32>
    %132 = vector.extract_strided_slice %131 {offsets = [0, 0], sizes = [8, 128], strides = [1, 1]} : vector<16x128xf32> to vector<8x128xf32>
    %133 = vector.extract_strided_slice %131 {offsets = [8, 0], sizes = [8, 128], strides = [1, 1]} : vector<16x128xf32> to vector<8x128xf32>
    %134 = arith.subf %115, %132 : vector<8x128xf32>
    %135 = arith.mulf %134, %133 : vector<8x128xf32>
    %136 = vector.broadcast %116 : vector<1x128xf32> to vector<8x128xf32>
    %137 = arith.mulf %135, %136 : vector<8x128xf32>
    %138 = vector.broadcast %117 : vector<1x128xf32> to vector<8x128xf32>
    %139 = arith.addf %137, %138 : vector<8x128xf32>
    %cst_58 = arith.constant 5.000000e-01 : f32
    %140 = vector.broadcast %cst_58 : f32 to vector<8x128xf32>
    %141 = arith.mulf %140, %139 : vector<8x128xf32>
    %cst_59 = arith.constant 0.707106769 : f32
    %142 = vector.broadcast %cst_59 : f32 to vector<8x128xf32>
    %143 = arith.mulf %139, %142 : vector<8x128xf32>
    %144 = math.absf %143 : vector<8x128xf32>
    %cst_60 = arith.constant 0.327591091 : f32
    %145 = vector.broadcast %cst_60 : f32 to vector<8x128xf32>
    %146 = arith.mulf %145, %144 : vector<8x128xf32>
    %cst_61 = arith.constant 1.000000e+00 : f32
    %147 = vector.broadcast %cst_61 : f32 to vector<8x128xf32>
    %148 = arith.addf %147, %146 : vector<8x128xf32>
    %149 = tpu.reciprocal %148 : vector<8x128xf32> -> vector<8x128xf32>
    %cst_62 = arith.constant 1.06140542 : f32
    %150 = vector.broadcast %cst_62 : f32 to vector<8x128xf32>
    %151 = arith.mulf %150, %149 : vector<8x128xf32>
    %cst_63 = arith.constant -1.45315206 : f32
    %152 = vector.broadcast %cst_63 : f32 to vector<8x128xf32>
    %153 = arith.addf %151, %152 : vector<8x128xf32>
    %154 = arith.mulf %153, %149 : vector<8x128xf32>
    %cst_64 = arith.constant 1.42141378 : f32
    %155 = vector.broadcast %cst_64 : f32 to vector<8x128xf32>
    %156 = arith.addf %154, %155 : vector<8x128xf32>
    %157 = arith.mulf %156, %149 : vector<8x128xf32>
    %cst_65 = arith.constant -0.284496725 : f32
    %158 = vector.broadcast %cst_65 : f32 to vector<8x128xf32>
    %159 = arith.addf %157, %158 : vector<8x128xf32>
    %160 = arith.mulf %159, %149 : vector<8x128xf32>
    %cst_66 = arith.constant 0.254829586 : f32
    %161 = vector.broadcast %cst_66 : f32 to vector<8x128xf32>
    %162 = arith.addf %160, %161 : vector<8x128xf32>
    %163 = arith.mulf %162, %149 : vector<8x128xf32>
    %cst_67 = arith.constant 0.000000e+00 : f32
    %164 = vector.broadcast %cst_67 : f32 to vector<8x128xf32>
    %165 = arith.subf %164, %144 : vector<8x128xf32>
    %166 = arith.mulf %165, %144 : vector<8x128xf32>
    %167 = math.exp %166 : vector<8x128xf32>
    %168 = arith.mulf %163, %167 : vector<8x128xf32>
    %cst_68 = arith.constant 1.000000e+00 : f32
    %169 = vector.broadcast %cst_68 : f32 to vector<8x128xf32>
    %170 = arith.subf %169, %168 : vector<8x128xf32>
    %cst_69 = arith.constant 0.000000e+00 : f32
    %171 = vector.broadcast %cst_69 : f32 to vector<8x128xf32>
    %172 = arith.cmpf olt, %143, %171 : vector<8x128xf32>
    %cst_70 = arith.constant 0.000000e+00 : f32
    %173 = vector.broadcast %cst_70 : f32 to vector<8x128xf32>
    %174 = arith.subf %173, %170 : vector<8x128xf32>
    %175 = arith.select %172, %174, %170 : vector<8x128xi1>, vector<8x128xf32>
    %cst_71 = arith.constant 1.000000e+00 : f32
    %176 = vector.broadcast %cst_71 : f32 to vector<8x128xf32>
    %177 = arith.addf %176, %175 : vector<8x128xf32>
    %178 = arith.mulf %141, %177 : vector<8x128xf32>
    %c0_72 = arith.constant 0 : index
    %c0_73 = arith.constant 0 : index
    %179 = vector.load %arg10[%c0_72, %c0_73] : memref<8x72xf32, #tpu.memory_space<vmem>>, vector<8x72xf32>
    %c0_74 = arith.constant 0 : index
    %c0_75 = arith.constant 0 : index
    %180 = vector.load %arg11[%c0_74, %c0_75] : memref<8x1xf32, #tpu.memory_space<vmem>>, vector<8x1xf32>
    %c9_i32_76 = arith.constant 9 : i32
    %181 = tpu.dynamic_rotate %178 by %c9_i32_76 dim 1 : vector<8x128xf32>, i32 -> vector<8x128xf32>
    %c0_77 = arith.constant 0 : index
    %c0_78 = arith.constant 0 : index
    %c0_79 = arith.constant 0 : index
    %182 = vector.load %arg3[%c0_77, %c0_78, %c0_79] : memref<9x1x128xf32, #tpu.memory_space<vmem>>, vector<1x1x128xf32>
    %183 = vector.shape_cast %182 : vector<1x1x128xf32> to vector<1x128xf32>
    %184 = vector.broadcast %183 : vector<1x128xf32> to vector<8x128xf32>
    %185 = arith.mulf %181, %184 : vector<8x128xf32>
    %c8_i32_80 = arith.constant 8 : i32
    %186 = tpu.dynamic_rotate %178 by %c8_i32_80 dim 1 : vector<8x128xf32>, i32 -> vector<8x128xf32>
    %c1_81 = arith.constant 1 : index
    %c0_82 = arith.constant 0 : index
    %c0_83 = arith.constant 0 : index
    %187 = vector.load %arg3[%c1_81, %c0_82, %c0_83] : memref<9x1x128xf32, #tpu.memory_space<vmem>>, vector<1x1x128xf32>
    %188 = vector.shape_cast %187 : vector<1x1x128xf32> to vector<1x128xf32>
    %189 = vector.broadcast %188 : vector<1x128xf32> to vector<8x128xf32>
    %190 = arith.mulf %186, %189 : vector<8x128xf32>
    %c7_i32_84 = arith.constant 7 : i32
    %191 = tpu.dynamic_rotate %178 by %c7_i32_84 dim 1 : vector<8x128xf32>, i32 -> vector<8x128xf32>
    %c2_85 = arith.constant 2 : index
    %c0_86 = arith.constant 0 : index
    %c0_87 = arith.constant 0 : index
    %192 = vector.load %arg3[%c2_85, %c0_86, %c0_87] : memref<9x1x128xf32, #tpu.memory_space<vmem>>, vector<1x1x128xf32>
    %193 = vector.shape_cast %192 : vector<1x1x128xf32> to vector<1x128xf32>
    %194 = vector.broadcast %193 : vector<1x128xf32> to vector<8x128xf32>
    %195 = arith.mulf %191, %194 : vector<8x128xf32>
    %c1_i32_88 = arith.constant 1 : i32
    %196 = tpu.dynamic_rotate %178 by %c1_i32_88 dim 1 : vector<8x128xf32>, i32 -> vector<8x128xf32>
    %c3_89 = arith.constant 3 : index
    %c0_90 = arith.constant 0 : index
    %c0_91 = arith.constant 0 : index
    %197 = vector.load %arg3[%c3_89, %c0_90, %c0_91] : memref<9x1x128xf32, #tpu.memory_space<vmem>>, vector<1x1x128xf32>
    %198 = vector.shape_cast %197 : vector<1x1x128xf32> to vector<1x128xf32>
    %199 = vector.broadcast %198 : vector<1x128xf32> to vector<8x128xf32>
    %200 = arith.mulf %196, %199 : vector<8x128xf32>
    %c4_92 = arith.constant 4 : index
    %c0_93 = arith.constant 0 : index
    %c0_94 = arith.constant 0 : index
    %201 = vector.load %arg3[%c4_92, %c0_93, %c0_94] : memref<9x1x128xf32, #tpu.memory_space<vmem>>, vector<1x1x128xf32>
    %202 = vector.shape_cast %201 : vector<1x1x128xf32> to vector<1x128xf32>
    %203 = vector.broadcast %202 : vector<1x128xf32> to vector<8x128xf32>
    %204 = arith.mulf %178, %203 : vector<8x128xf32>
    %c127_i32_95 = arith.constant 127 : i32
    %205 = tpu.dynamic_rotate %178 by %c127_i32_95 dim 1 : vector<8x128xf32>, i32 -> vector<8x128xf32>
    %c5_96 = arith.constant 5 : index
    %c0_97 = arith.constant 0 : index
    %c0_98 = arith.constant 0 : index
    %206 = vector.load %arg3[%c5_96, %c0_97, %c0_98] : memref<9x1x128xf32, #tpu.memory_space<vmem>>, vector<1x1x128xf32>
    %207 = vector.shape_cast %206 : vector<1x1x128xf32> to vector<1x128xf32>
    %208 = vector.broadcast %207 : vector<1x128xf32> to vector<8x128xf32>
    %209 = arith.mulf %205, %208 : vector<8x128xf32>
    %c121_i32_99 = arith.constant 121 : i32
    %210 = tpu.dynamic_rotate %178 by %c121_i32_99 dim 1 : vector<8x128xf32>, i32 -> vector<8x128xf32>
    %c6_100 = arith.constant 6 : index
    %c0_101 = arith.constant 0 : index
    %c0_102 = arith.constant 0 : index
    %211 = vector.load %arg3[%c6_100, %c0_101, %c0_102] : memref<9x1x128xf32, #tpu.memory_space<vmem>>, vector<1x1x128xf32>
    %212 = vector.shape_cast %211 : vector<1x1x128xf32> to vector<1x128xf32>
    %213 = vector.broadcast %212 : vector<1x128xf32> to vector<8x128xf32>
    %214 = arith.mulf %210, %213 : vector<8x128xf32>
    %c120_i32_103 = arith.constant 120 : i32
    %215 = tpu.dynamic_rotate %178 by %c120_i32_103 dim 1 : vector<8x128xf32>, i32 -> vector<8x128xf32>
    %c7_104 = arith.constant 7 : index
    %c0_105 = arith.constant 0 : index
    %c0_106 = arith.constant 0 : index
    %216 = vector.load %arg3[%c7_104, %c0_105, %c0_106] : memref<9x1x128xf32, #tpu.memory_space<vmem>>, vector<1x1x128xf32>
    %217 = vector.shape_cast %216 : vector<1x1x128xf32> to vector<1x128xf32>
    %218 = vector.broadcast %217 : vector<1x128xf32> to vector<8x128xf32>
    %219 = arith.mulf %215, %218 : vector<8x128xf32>
    %c119_i32_107 = arith.constant 119 : i32
    %220 = tpu.dynamic_rotate %178 by %c119_i32_107 dim 1 : vector<8x128xf32>, i32 -> vector<8x128xf32>
    %c8_108 = arith.constant 8 : index
    %c0_109 = arith.constant 0 : index
    %c0_110 = arith.constant 0 : index
    %221 = vector.load %arg3[%c8_108, %c0_109, %c0_110] : memref<9x1x128xf32, #tpu.memory_space<vmem>>, vector<1x1x128xf32>
    %222 = vector.shape_cast %221 : vector<1x1x128xf32> to vector<1x128xf32>
    %223 = vector.broadcast %222 : vector<1x128xf32> to vector<8x128xf32>
    %224 = arith.mulf %220, %223 : vector<8x128xf32>
    %225 = tpu.concatenate %185, %190, %195, %200, %204, %209, %214, %219, %224 in 0 : vector<8x128xf32>, vector<8x128xf32>, vector<8x128xf32>, vector<8x128xf32>, vector<8x128xf32>, vector<8x128xf32>, vector<8x128xf32>, vector<8x128xf32>, vector<8x128xf32> -> vector<72x128xf32>
    %cst_111 = arith.constant dense<0.000000e+00> : vector<8x128xf32>
    %226 = tpu.matmul %179, %225, %cst_111 {dimension_numbers = #tpu.dot_dimension_numbers<[1], [0], [0], [1], [0, 0, 1, 1], [], []>} : vector<8x72xf32>, vector<72x128xf32>, vector<8x128xf32> -> vector<8x128xf32>
    %227 = vector.broadcast %180 : vector<8x1xf32> to vector<8x128xf32>
    %228 = arith.addf %226, %227 : vector<8x128xf32>
    %229 = arith.addf %228, %0 : vector<8x128xf32>
    %c0_112 = arith.constant 0 : index
    %c0_113 = arith.constant 0 : index
    %230 = vector.load %arg12[%c0_112, %c0_113] : memref<8x128xf32, #tpu.memory_space<vmem>>, vector<8x128xf32>
    tpu.vector_store %arg12[%c0_112, %c0_113], %229 {strides = array<i32>} : memref<8x128xf32, #tpu.memory_space<vmem>>, vector<8x128xf32>,
    return
  }
}

</mosaic_0001>

<llo_original>
// kernel: forward.1
$region0: #{forward.1}
  #allocation0 [shape = 'u32[]', space=smem, size = 0x4, offset = 0x4, fixed_abs, tag = 'smem constant byte address 0x4 - core index']
  #allocation1 [shape = 'u32[72,128]{1,0:T(1,128)}', space=vmem, size = 0x9000, scoped, tag = 'internal scratch']
  %s0 = inlined_call_operand.vmem [shape: f32[8,128], index: 0, kind: input, shape index: {}]
  %s1 = inlined_call_operand.vmem [shape: f32[128,8], index: 1, kind: input, shape index: {}]
  %s2 = inlined_call_operand.vmem [shape: f32[8,128], index: 2, kind: input, shape index: {}]
  %s3 = inlined_call_operand.vmem [shape: f32[9,1,128], index: 3, kind: input, shape index: {}]
  %s4 = inlined_call_operand.vmem [shape: f32[1,128], index: 4, kind: input, shape index: {}]
  %s5 = inlined_call_operand.vmem [shape: f32[1,128], index: 5, kind: input, shape index: {}]
  %s6 = inlined_call_operand.vmem [shape: f32[1,128], index: 6, kind: input, shape index: {}]
  %s7 = inlined_call_operand.vmem [shape: f32[1,128], index: 7, kind: input, shape index: {}]
  %s8 = inlined_call_operand.vmem [shape: f32[8,72], index: 8, kind: input, shape index: {}]
  %s9 = inlined_call_operand.vmem [shape: f32[8,1], index: 9, kind: input, shape index: {}]
  %s10 = inlined_call_operand.vmem [shape: f32[8,72], index: 10, kind: input, shape index: {}]
  %s11 = inlined_call_operand.vmem [shape: f32[8,1], index: 11, kind: input, shape index: {}]
  %s12 = inlined_call_operand.vmem [shape: f32[8,128], index: 12, kind: output, shape index: {}]
  %s13 = sld [smem:[#allocation0]]
  $region58: #{forward.1} parent=0
    _
  %s15 = ssub.s32 1, %s13
  %s16 = scalar_select 0, %s15, %s13
  // Predicated region
  $region2: #{forward.1} parent=0 // pred_check
    _
  $region3: #{forward.1} parent=0 // pred_check_branch
    %18 = sbr.rel (0) target = $region5
  $region4: #{forward.1} parent=0 // pred_region
    _
  $region5: #{forward.1} parent=0 // pred_fallthru
    _
  // Predicated region
  $region6: #{forward.1} parent=0 // pred_check
    _
  $region7: #{forward.1} parent=0 // pred_check_branch
    %20 = sbr.rel (0) target = $region9
  $region8: #{forward.1} parent=0 // pred_region
    _
  $region9: #{forward.1} parent=0 // pred_fallthru
    _
  // Predicated region
  $region10: #{forward.1} parent=0 // pred_check
    _
  $region11: #{forward.1} parent=0 // pred_check_branch
    %22 = sbr.rel (0) target = $region13
  $region12: #{forward.1} parent=0 // pred_region
    _
  $region13: #{forward.1} parent=0 // pred_fallthru
    _
  // Predicated region
  $region14: #{forward.1} parent=0 // pred_check
    _
  $region15: #{forward.1} parent=0 // pred_check_branch
    %24 = sbr.rel (0) target = $region17
  $region16: #{forward.1} parent=0 // pred_region
    _
  $region17: #{forward.1} parent=0 // pred_fallthru
    _
  // Predicated region
  $region18: #{forward.1} parent=0 // pred_check
    _
  $region19: #{forward.1} parent=0 // pred_check_branch
    %26 = sbr.rel (0) target = $region21
  $region20: #{forward.1} parent=0 // pred_region
    _
  $region21: #{forward.1} parent=0 // pred_fallthru
    _
  // Predicated region
  $region22: #{forward.1} parent=0 // pred_check
    _
  $region23: #{forward.1} parent=0 // pred_check_branch
    %28 = sbr.rel (0) target = $region25
  $region24: #{forward.1} parent=0 // pred_region
    _
  $region25: #{forward.1} parent=0 // pred_fallthru
    _
  // Predicated region
  $region26: #{forward.1} parent=0 // pred_check
    _
  $region27: #{forward.1} parent=0 // pred_check_branch
    %30 = sbr.rel (0) target = $region29
  $region28: #{forward.1} parent=0 // pred_region
    _
  $region29: #{forward.1} parent=0 // pred_fallthru
    _
  // Predicated region
  $region30: #{forward.1} parent=0 // pred_check
    _
  $region31: #{forward.1} parent=0 // pred_check_branch
    %32 = sbr.rel (0) target = $region33
  $region32: #{forward.1} parent=0 // pred_region
    _
  $region33: #{forward.1} parent=0 // pred_fallthru
    _
  // Predicated region
  $region34: #{forward.1} parent=0 // pred_check
    _
  $region35: #{forward.1} parent=0 // pred_check_branch
    %34 = sbr.rel (0) target = $region37
  $region36: #{forward.1} parent=0 // pred_region
    _
  $region37: #{forward.1} parent=0 // pred_fallthru
    _
  // Predicated region
  $region38: #{forward.1} parent=0 // pred_check
    _
  $region39: #{forward.1} parent=0 // pred_check_branch
    %36 = sbr.rel (0) target = $region41
  $region40: #{forward.1} parent=0 // pred_region
    _
  $region41: #{forward.1} parent=0 // pred_fallthru
    _
  // Predicated region
  $region42: #{forward.1} parent=0 // pred_check
    _
  $region43: #{forward.1} parent=0 // pred_check_branch
    %38 = sbr.rel (0) target = $region45
  $region44: #{forward.1} parent=0 // pred_region
    _
  $region45: #{forward.1} parent=0 // pred_fallthru
    _
  // Predicated region
  $region46: #{forward.1} parent=0 // pred_check
    _
  $region47: #{forward.1} parent=0 // pred_check_branch
    %40 = sbr.rel (0) target = $region49
  $region48: #{forward.1} parent=0 // pred_region
    _
  $region49: #{forward.1} parent=0 // pred_fallthru
    _
  %v41 = vld [vmem:[%s0] sm:$0xff]
  %v42 = vld [vmem:[%s1] sm:$0xff]
  %v43 = vld [vmem:[%s1 + $0x8] sm:$0xff]
  %v44 = vld [vmem:[%s1 + $0x10] sm:$0xff]
  %v45 = vld [vmem:[%s1 + $0x18] sm:$0xff]
  %v46 = vld [vmem:[%s1 + $0x20] sm:$0xff]
  %v47 = vld [vmem:[%s1 + $0x28] sm:$0xff]
  %v48 = vld [vmem:[%s1 + $0x30] sm:$0xff]
  %v49 = vld [vmem:[%s1 + $0x38] sm:$0xff]
  %v50 = vld [vmem:[%s1 + $0x40] sm:$0xff]
  %v51 = vld [vmem:[%s1 + $0x48] sm:$0xff]
  %v52 = vld [vmem:[%s1 + $0x50] sm:$0xff]
  %v53 = vld [vmem:[%s1 + $0x58] sm:$0xff]
  %v54 = vld [vmem:[%s1 + $0x60] sm:$0xff]
  %v55 = vld [vmem:[%s1 + $0x68] sm:$0xff]
  %v56 = vld [vmem:[%s1 + $0x70] sm:$0xff]
  %v57 = vld [vmem:[%s1 + $0x78] sm:$0xff]
  %v58 = vld [vmem:[%s2] sm:$0xff]
  %v59 = vld [vmem:[%s4] sm:$0x1]
  %v60 = vld [vmem:[%s5] sm:$0x1]
  %v61 = vmul.f32 %v41, %v41
  %62 = vmatpush.msra.mxu0 %v57
  %63 = vmatpush.msra.mxu0 %v56
  %64 = vmatpush.msra.mxu0 %v55
  %65 = vmatpush.msra.mxu0 %v54
  %66 = vmatpush.msra.mxu0 %v53
  %67 = vmatpush.msra.mxu0 %v52
  %68 = vmatpush.msra.mxu0 %v51
  %69 = vmatpush.msra.mxu0 %v50
  %70 = vmatpush.msra.mxu0 %v49
  %71 = vmatpush.msra.mxu0 %v48
  %72 = vmatpush.msra.mxu0 %v47
  %73 = vmatpush.msra.mxu0 %v46
  %74 = vmatpush.msra.mxu0 %v45
  %75 = vmatpush.msra.mxu0 %v44
  %76 = vmatpush.msra.mxu0 %v43
  %77 = vmatpush.msra.mxu0 %v42
  %78 = vmatmul.f32.gmra.mxu0 %v41
  %v79 = vpop.f32.mrf.mxu0
  %v80 = vadd.f32 0.0, %v79
  %81 = vmatmul.f32.gmra.mxu0 %v61
  %v82 = vpop.f32.mrf.mxu0
  %v83 = vadd.f32 0.0, %v82
  %84 = vdwg.mxu0
  %v85 = vmul.f32 %v80, 0.0625
  %v86 = vmul.f32 %v83, 0.0625
  %v87 = vmul.f32 %v85, %v85
  %v88 = vsub.f32 %v86, %v87
  %v89 = vadd.f32 %v88, 1e-05
  %v90 = vrsqrt.pop %v89
  %v91 = vmul.f32 %v90, %v89
  %v92 = vmul.f32 %v91, %v90
  %v93 = vmul.f32 0.5, %v92
  %v94 = vsub.f32 1.5, %v93
  %v95 = vmul.f32 %v90, %v94
  %vm96 = vweird.f32 %v89
  %vm97 = vweird.f32 %v90
  %vm98 = vmor %vm96, %vm97
  %v99 = vsel %vm98, %v90, %v95
  %vm100 = vcmask 64512
  %v102 = vsel %vm100, %v85, 0
  %v105 = vsel %vm100, %v99, 0
  %107 = vmatpush.msra.mxu0 0.0
  %108 = vmatpush.msra.mxu0 0.0
  %109 = vmatpush.msra.mxu0 0.0
  %110 = vmatpush.msra.mxu0 0.0
  %111 = vmatpush.msra.mxu0 0.0
  %112 = vmatpush.msra.mxu0 0.0
  %113 = vmatpush.msra.mxu0 0.0
  %114 = vmatpush.msra.mxu0 0.0
  %115 = vmatpush.msra.mxu0 0.0
  %116 = vmatpush.msra.mxu0 0.0
  %117 = vmatpush.msra.mxu0 0.0
  %118 = vmatpush.msra.mxu0 0.0
  %119 = vmatpush.msra.mxu0 0.0
  %120 = vmatpush.msra.mxu0 0.0
  %121 = vmatpush.msra.mxu0 0.0
  %122 = vmatpush.msra.mxu0 %v58
  %123 = vmatmul.f32.gmra.mxu0 %v102
  %v124 = vpop.f32.mrf.mxu0
  %v125 = vadd.f32 0.0, %v124
  %126 = vmatmul.f32.gmra.mxu0 %v105
  %v127 = vpop.f32.mrf.mxu0
  %v128 = vadd.f32 0.0, %v127
  %129 = vdwg.mxu0
  %v130 = vsub.f32 %v41, %v125
  %v131 = vmul.f32 %v130, %v128
  %v133 = vperm.slane %v59, 0
  %v135 = vmul.f32 %v131, %v133
  %v137 = vperm.slane %v60, 0
  %v139 = vadd.f32 %v135, %v137
  %v140 = vmul.f32 %v139, 0.5
  %v141 = vmul.f32 %v139, 0.70710677
  %v142 = vand.u32 2147483647, %v141
  %v143 = vmul.f32 %v142, 0.3275911
  %v144 = vadd.f32 %v143, 1.0
  %v145 = vrcp.pop %v144
  %v146 = vmul.f32 %v144, %v145
  %v147 = vsub.f32 1.0, %v146
  %v148 = vmul.f32 %v145, %v147
  %v149 = vadd.f32 %v145, %v148
  %vm150 = vweird.f32 %v144
  %vm151 = vweird.f32 %v145
  %vm152 = vmor %vm150, %vm151
  %v153 = vsel %vm152, %v145, %v149
  %v154 = vand.u32 2147483647, %v144
  %vm155 = vcmp.eq.f32.partialorder %v154, 8.507059e+37
  %v156 = vand.u32 %v144, 2147483648
  %v157 = vor.u32 1.1754944e-38, %v156
  %v158 = vsel %vm155, %v157, %v153
  %v159 = vmul.f32 %v158, 1.0614054
  %v160 = vadd.f32 %v159, -1.4531521
  %v161 = vmul.f32 %v160, %v158
  %v162 = vadd.f32 %v161, 1.4214138
  %v163 = vmul.f32 %v162, %v158
  %v164 = vadd.f32 %v163, -0.28449672
  %v165 = vmul.f32 %v164, %v158
  %v166 = vadd.f32 %v165, 0.2548296
  %v167 = vmul.f32 %v166, %v158
  %v168 = vsub.f32 0.0, %v142
  %v169 = vmul.f32 %v168, %v142
  %v170 = vmul.f32 %v169, 1.442695
  %v171 = vpow.pop %v170
  %v172 = vmul.f32 %v167, %v171
  %v173 = vsub.f32 1.0, %v172
  %vm174 = vcmp.lt.f32.partialorder %v141, 0.0
  %v175 = vsub.f32 0.0, %v173
  %v176 = vsel %vm174, %v175, %v173
  %v177 = vadd.f32 %v176, 1.0
  %v178 = vmul.f32 %v140, %v177
  %v179 = vld [vmem:[%s8] sm:$0xff]
  %v180 = vld [vmem:[%s9] sm:$0xff]
  %181 = vrot.lane.b32.xlu0 %v178, 9
  %v182 = vpop.permute.xlu0 %181
  %v183 = vld [vmem:[%s3] sm:$0x1]
  %v185 = vperm.slane %v183, 0
  %v187 = vmul.f32 %v182, %v185
  %188 = vrot.lane.b32.xlu0 %v178, 8
  %v189 = vpop.permute.xlu0 %188
  %s190 = scalar_lea.vmem %s3, 1
  %v191 = vld [vmem:[%s190] sm:$0x1]
  %v193 = vperm.slane %v191, 0
  %v195 = vmul.f32 %v189, %v193
  %196 = vrot.lane.b32.xlu0 %v178, 7
  %v197 = vpop.permute.xlu0 %196
  %s198 = scalar_lea.vmem %s3, 2
  %v199 = vld [vmem:[%s198] sm:$0x1]
  %v201 = vperm.slane %v199, 0
  %v203 = vmul.f32 %v197, %v201
  %204 = vrot.lane.b32.xlu0 %v178, 1
  %v205 = vpop.permute.xlu0 %204
  %s206 = scalar_lea.vmem %s3, 3
  %v207 = vld [vmem:[%s206] sm:$0x1]
  %v209 = vperm.slane %v207, 0
  %v211 = vmul.f32 %v205, %v209
  %s212 = scalar_lea.vmem %s3, 4
  %v213 = vld [vmem:[%s212] sm:$0x1]
  %v215 = vperm.slane %v213, 0
  %v217 = vmul.f32 %v178, %v215
  %218 = vrot.lane.b32.xlu0 %v178, 127
  %v219 = vpop.permute.xlu0 %218
  %s220 = scalar_lea.vmem %s3, 5
  %v221 = vld [vmem:[%s220] sm:$0x1]
  %v223 = vperm.slane %v221, 0
  %v225 = vmul.f32 %v219, %v223
  %226 = vrot.lane.b32.xlu0 %v178, 121
  %v227 = vpop.permute.xlu0 %226
  %s228 = scalar_lea.vmem %s3, 6
  %v229 = vld [vmem:[%s228] sm:$0x1]
  %v231 = vperm.slane %v229, 0
  %v233 = vmul.f32 %v227, %v231
  %234 = vrot.lane.b32.xlu0 %v178, 120
  %v235 = vpop.permute.xlu0 %234
  %s236 = scalar_lea.vmem %s3, 7
  %v237 = vld [vmem:[%s236] sm:$0x1]
  %v239 = vperm.slane %v237, 0
  %v241 = vmul.f32 %v235, %v239
  %242 = vrot.lane.b32.xlu0 %v178, 119
  %v243 = vpop.permute.xlu0 %242
  %s244 = scalar_lea.vmem %s3, 8
  %v245 = vld [vmem:[%s244] sm:$0x1]
  %v247 = vperm.slane %v245, 0
  %v249 = vmul.f32 %v243, %v247
  %251 = vset.pattern.permute.xlu0 0
  %252 = vperm.xlu0 %251, %v180
  %v253 = vpop.permute.xlu0 %252
  %vm255 = vcmask 588800
  %v257 = vsel %vm255, %v179, 0
  %259 = vmatpush.msra.mxu0 0.0
  %260 = vmatpush.msra.mxu0 0.0
  %261 = vmatpush.msra.mxu0 0.0
  %262 = vmatpush.msra.mxu0 0.0
  %263 = vmatpush.msra.mxu0 0.0
  %264 = vmatpush.msra.mxu0 0.0
  %265 = vmatpush.msra.mxu0 0.0
  %266 = vmatpush.msra.mxu0 %v249
  %267 = vmatpush.msra.mxu0 %v241
  %268 = vmatpush.msra.mxu0 %v233
  %269 = vmatpush.msra.mxu0 %v225
  %270 = vmatpush.msra.mxu0 %v217
  %271 = vmatpush.msra.mxu0 %v211
  %272 = vmatpush.msra.mxu0 %v203
  %273 = vmatpush.msra.mxu0 %v195
  %274 = vmatpush.msra.mxu0 %v187
  %275 = vmatmul.f32.gmra.mxu0 %v257
  %v276 = vpop.f32.mrf.mxu0
  %v277 = vadd.f32 %v253, %v276
  %278 = vdwg.mxu0
  %v279 = vld [vmem:[%s6] sm:$0x1]
  %v280 = vld [vmem:[%s7] sm:$0x1]
  %v281 = vmul.f32 %v277, %v277
  %282 = vmatpush.msra.mxu0 %v57
  %283 = vmatpush.msra.mxu0 %v56
  %284 = vmatpush.msra.mxu0 %v55
  %285 = vmatpush.msra.mxu0 %v54
  %286 = vmatpush.msra.mxu0 %v53
  %287 = vmatpush.msra.mxu0 %v52
  %288 = vmatpush.msra.mxu0 %v51
  %289 = vmatpush.msra.mxu0 %v50
  %290 = vmatpush.msra.mxu0 %v49
  %291 = vmatpush.msra.mxu0 %v48
  %292 = vmatpush.msra.mxu0 %v47
  %293 = vmatpush.msra.mxu0 %v46
  %294 = vmatpush.msra.mxu0 %v45
  %295 = vmatpush.msra.mxu0 %v44
  %296 = vmatpush.msra.mxu0 %v43
  %297 = vmatpush.msra.mxu0 %v42
  %298 = vmatmul.f32.gmra.mxu0 %v277
  %v299 = vpop.f32.mrf.mxu0
  %v300 = vadd.f32 0.0, %v299
  %301 = vmatmul.f32.gmra.mxu0 %v281
  %v302 = vpop.f32.mrf.mxu0
  %v303 = vadd.f32 0.0, %v302
  %304 = vdwg.mxu0
  %v305 = vmul.f32 %v300, 0.0625
  %v306 = vmul.f32 %v303, 0.0625
  %v307 = vmul.f32 %v305, %v305
  %v308 = vsub.f32 %v306, %v307
  %v309 = vadd.f32 %v308, 1e-05
  %v310 = vrsqrt.pop %v309
  %v311 = vmul.f32 %v310, %v309
  %v312 = vmul.f32 %v311, %v310
  %v313 = vmul.f32 0.5, %v312
  %v314 = vsub.f32 1.5, %v313
  %v315 = vmul.f32 %v310, %v314
  %vm316 = vweird.f32 %v309
  %vm317 = vweird.f32 %v310
  %vm318 = vmor %vm316, %vm317
  %v319 = vsel %vm318, %v310, %v315
  %v321 = vsel %vm100, %v305, 0
  %v324 = vsel %vm100, %v319, 0
  %326 = vmatpush.msra.mxu0 0.0
  %327 = vmatpush.msra.mxu0 0.0
  %328 = vmatpush.msra.mxu0 0.0
  %329 = vmatpush.msra.mxu0 0.0
  %330 = vmatpush.msra.mxu0 0.0
  %331 = vmatpush.msra.mxu0 0.0
  %332 = vmatpush.msra.mxu0 0.0
  %333 = vmatpush.msra.mxu0 0.0
  %334 = vmatpush.msra.mxu0 0.0
  %335 = vmatpush.msra.mxu0 0.0
  %336 = vmatpush.msra.mxu0 0.0
  %337 = vmatpush.msra.mxu0 0.0
  %338 = vmatpush.msra.mxu0 0.0
  %339 = vmatpush.msra.mxu0 0.0
  %340 = vmatpush.msra.mxu0 0.0
  %341 = vmatpush.msra.mxu0 %v58
  %342 = vmatmul.f32.gmra.mxu0 %v321
  %v343 = vpop.f32.mrf.mxu0
  %v344 = vadd.f32 0.0, %v343
  %345 = vmatmul.f32.gmra.mxu0 %v324
  %v346 = vpop.f32.mrf.mxu0
  %v347 = vadd.f32 0.0, %v346
  %348 = vdwg.mxu0
  %v349 = vsub.f32 %v277, %v344
  %v350 = vmul.f32 %v349, %v347
  %v352 = vperm.slane %v279, 0
  %v354 = vmul.f32 %v350, %v352
  %v356 = vperm.slane %v280, 0
  %v358 = vadd.f32 %v354, %v356
  %v359 = vmul.f32 %v358, 0.5
  %v360 = vmul.f32 %v358, 0.70710677
  %v361 = vand.u32 2147483647, %v360
  %v362 = vmul.f32 %v361, 0.3275911
  %v363 = vadd.f32 %v362, 1.0
  %v364 = vrcp.pop %v363
  %v365 = vmul.f32 %v363, %v364
  %v366 = vsub.f32 1.0, %v365
  %v367 = vmul.f32 %v364, %v366
  %v368 = vadd.f32 %v364, %v367
  %vm369 = vweird.f32 %v363
  %vm370 = vweird.f32 %v364
  %vm371 = vmor %vm369, %vm370
  %v372 = vsel %vm371, %v364, %v368
  %v373 = vand.u32 2147483647, %v363
  %vm374 = vcmp.eq.f32.partialorder %v373, 8.507059e+37
  %v375 = vand.u32 %v363, 2147483648
  %v376 = vor.u32 1.1754944e-38, %v375
  %v377 = vsel %vm374, %v376, %v372
  %v378 = vmul.f32 %v377, 1.0614054
  %v379 = vadd.f32 %v378, -1.4531521
  %v380 = vmul.f32 %v379, %v377
  %v381 = vadd.f32 %v380, 1.4214138
  %v382 = vmul.f32 %v381, %v377
  %v383 = vadd.f32 %v382, -0.28449672
  %v384 = vmul.f32 %v383, %v377
  %v385 = vadd.f32 %v384, 0.2548296
  %v386 = vmul.f32 %v385, %v377
  %v387 = vsub.f32 0.0, %v361
  %v388 = vmul.f32 %v387, %v361
  %v389 = vmul.f32 %v388, 1.442695
  %v390 = vpow.pop %v389
  %v391 = vmul.f32 %v386, %v390
  %v392 = vsub.f32 1.0, %v391
  %vm393 = vcmp.lt.f32.partialorder %v360, 0.0
  %v394 = vsub.f32 0.0, %v392
  %v395 = vsel %vm393, %v394, %v392
  %v396 = vadd.f32 %v395, 1.0
  %v397 = vmul.f32 %v359, %v396
  %v398 = vld [vmem:[%s10] sm:$0xff]
  %v399 = vld [vmem:[%s11] sm:$0xff]
  %400 = vrot.lane.b32.xlu0 %v397, 9
  %v401 = vpop.permute.xlu0 %400
  %v402 = vmul.f32 %v401, %v185
  %403 = vrot.lane.b32.xlu0 %v397, 8
  %v404 = vpop.permute.xlu0 %403
  %v405 = vmul.f32 %v404, %v193
  %406 = vrot.lane.b32.xlu0 %v397, 7
  %v407 = vpop.permute.xlu0 %406
  %v408 = vmul.f32 %v407, %v201
  %409 = vrot.lane.b32.xlu0 %v397, 1
  %v410 = vpop.permute.xlu0 %409
  %v411 = vmul.f32 %v410, %v209
  %v412 = vmul.f32 %v397, %v215
  %413 = vrot.lane.b32.xlu0 %v397, 127
  %v414 = vpop.permute.xlu0 %413
  %v415 = vmul.f32 %v414, %v223
  %416 = vrot.lane.b32.xlu0 %v397, 121
  %v417 = vpop.permute.xlu0 %416
  %v418 = vmul.f32 %v417, %v231
  %419 = vrot.lane.b32.xlu0 %v397, 120
  %v420 = vpop.permute.xlu0 %419
  %v421 = vmul.f32 %v420, %v239
  %422 = vrot.lane.b32.xlu0 %v397, 119
  %v423 = vpop.permute.xlu0 %422
  %v424 = vmul.f32 %v423, %v247
  %426 = vset.pattern.permute.xlu0 0
  %427 = vperm.xlu0 %426, %v399
  %v428 = vpop.permute.xlu0 %427
  %v431 = vsel %vm255, %v398, 0
  %433 = vmatpush.msra.mxu0 0.0
  %434 = vmatpush.msra.mxu0 0.0
  %435 = vmatpush.msra.mxu0 0.0
  %436 = vmatpush.msra.mxu0 0.0
  %437 = vmatpush.msra.mxu0 0.0
  %438 = vmatpush.msra.mxu0 0.0
  %439 = vmatpush.msra.mxu0 0.0
  %440 = vmatpush.msra.mxu0 %v424
  %441 = vmatpush.msra.mxu0 %v421
  %442 = vmatpush.msra.mxu0 %v418
  %443 = vmatpush.msra.mxu0 %v415
  %444 = vmatpush.msra.mxu0 %v412
  %445 = vmatpush.msra.mxu0 %v411
  %446 = vmatpush.msra.mxu0 %v408
  %447 = vmatpush.msra.mxu0 %v405
  %448 = vmatpush.msra.mxu0 %v402
  %449 = vmatmul.f32.gmra.mxu0 %v431
  %v450 = vpop.f32.mrf.mxu0
  %v451 = vadd.f32 %v428, %v450
  %452 = vdwg.mxu0
  %v453 = vadd.f32 %v451, %v41
  %454 = vst [vmem:[%s12] sm:$0xff] %v453
  // Predicated region
  $region50: #{forward.1} parent=0 // pred_check
    _
  $region51: #{forward.1} parent=0 // pred_check_branch
    %456 = sbr.rel (0) target = $region53
  $region52: #{forward.1} parent=0 // pred_region
    _
  $region53: #{forward.1} parent=0 // pred_fallthru
    _
  // Predicated region
  $region54: #{forward.1} parent=0 // pred_check
    _
  $region55: #{forward.1} parent=0 // pred_check_branch
    %458 = sbr.rel (0) target = $region57
  $region56: #{forward.1} parent=0 // pred_region
    _
  $region57: #{forward.1} parent=0 // pred_fallthru
    _

</llo_original>
